<compile_context>
chip_gen: v6e
topology: v6e:2x2x1
jax: 0.10.0
libtpu: 0.0.40
codegen_flags: <defaults>
</compile_context>

<pallas_src>
import jax
import jax.numpy as jnp
from jax.experimental import pallas as pl
from jax.experimental.pallas import tpu as pltpu

_LANE = 128
_SUBLANE = 16           # bf16 sublane packing -> keep batch tiles multiples of 16
_NEG_SLOPE = 0.01       # PyTorch nn.LeakyReLU default negative_slope


def _round_up(n, m):
    return ((n + m - 1) // m) * m


def _mlp_kernel(x_ref, w1_ref, b1_ref, w2_ref, b2_ref, o_ref):
    # fc1 on the MXU: bf16 x bf16 -> f32 accumulate.  (TB, I) @ (I, H)
    h = jnp.dot(x_ref[...], w1_ref[...], preferred_element_type=jnp.float32)
    # bias + LeakyReLU in f32 on the VPU.
    h = h + b1_ref[...]
    h = jnp.where(h > 0, h, _NEG_SLOPE * h)
    # fc2 on the MXU: cast activations to bf16 for the MXU feed.  (TB, H) @ (H, O_pad)
    out = jnp.dot(h.astype(w2_ref.dtype), w2_ref[...],
                  preferred_element_type=jnp.float32)
    out = out + b2_ref[...]
    # Lane-dense store: O_pad is a multiple of 128, so this is an unmasked vst.
    o_ref[...] = out.astype(o_ref.dtype)


def encode_mlp(x, w1, b1, w2, b2, *, block_b=1024):
    """y = leaky_relu(x @ w1 + b1) @ w2 + b2.

    x : (B, I)   w1 : (I, H)   b1 : (1, H)   w2 : (H, O)   b2 : (1, O)
    Returns (B, O) in x.dtype.
    """
    B, I = x.shape
    H = w1.shape[1]
    O = w2.shape[1]
    out_dtype = x.dtype

    # ---- batch tiling -------------------------------------------------------
    block_b = _round_up(block_b, _SUBLANE)
    tb = _round_up(B, _SUBLANE) if B <= block_b else block_b
    b_pad = _round_up(B, tb)
    grid = (b_pad // tb,)

    # ---- lane-dense output: pad O (and its weight/bias columns) to 128k -----
    o_pad = _round_up(O, _LANE)

    # ---- dtype / padding prep: bf16 MXU operands, f32 biases ----------------
    x_p = x if b_pad == B else jnp.pad(x, ((0, b_pad - B), (0, 0)))
    x_p = x_p.astype(jnp.bfloat16)
    w1_p = w1.astype(jnp.bfloat16)
    b1_p = b1.astype(jnp.float32)
    w2_p = jnp.pad(w2, ((0, 0), (0, o_pad - O))).astype(jnp.bfloat16)
    b2_p = jnp.pad(b2, ((0, 0), (0, o_pad - O))).astype(jnp.float32)

    out_itemsize = jnp.dtype(out_dtype).itemsize
    cost = pl.CostEstimate(
        flops=2 * b_pad * (I * H + H * o_pad),
        transcendentals=0,
        bytes_accessed=(x_p.size * 2 + w1_p.size * 2 + w2_p.size * 2
                        + b1_p.size * 4 + b2_p.size * 4
                        + b_pad * o_pad * out_itemsize),
    )

    out = pl.pallas_call(
        _mlp_kernel,
        out_shape=jax.ShapeDtypeStruct((b_pad, o_pad), out_dtype),
        grid=grid,
        in_specs=[
            pl.BlockSpec((tb, I), lambda i: (i, 0)),      # x: tiled over batch
            pl.BlockSpec((I, H), lambda i: (0, 0)),       # w1: VMEM-resident
            pl.BlockSpec((1, H), lambda i: (0, 0)),       # b1: VMEM-resident
            pl.BlockSpec((H, o_pad), lambda i: (0, 0)),   # w2: VMEM-resident (lane-padded)
            pl.BlockSpec((1, o_pad), lambda i: (0, 0)),   # b2: VMEM-resident (lane-padded)
        ],
        out_specs=pl.BlockSpec((tb, o_pad), lambda i: (i, 0)),
        compiler_params=pltpu.CompilerParams(
            dimension_semantics=("parallel",),            # shard batch across TCs on v7x
            vmem_limit_bytes=32 * 1024 * 1024,
        ),
        cost_estimate=cost,
    )(x_p, w1_p, b1_p, w2_p, b2_p)

    # Slice off batch padding and the lane padding of the output dim.
    return out[:B, :O]


def init_params(key, input_size, output_size, hidden_size, dtype=jnp.float32):
    """Deterministic PyTorch-style uniform init: U(-1/sqrt(fan_in), 1/sqrt(fan_in))."""
    k1, k2, k3, k4 = jax.random.split(key, 4)
    bound1 = 1.0 / (input_size ** 0.5)
    bound2 = 1.0 / (hidden_size ** 0.5)
    w1 = jax.random.uniform(k1, (input_size, hidden_size), dtype, -bound1, bound1)
    b1 = jax.random.uniform(k2, (1, hidden_size), dtype, -bound1, bound1)
    w2 = jax.random.uniform(k3, (hidden_size, output_size), dtype, -bound2, bound2)
    b2 = jax.random.uniform(k4, (1, output_size), dtype, -bound2, bound2)
    return w1, b1, w2, b2


def reference_mlp(x, w1, b1, w2, b2):
    h = x @ w1 + b1
    h = jnp.where(h > 0, h, _NEG_SLOPE * h)
    return h @ w2 + b2


if __name__ == "__main__":
    input_size, hidden_size, output_size = 16, 32, 8
    batch = 200  # not a tile multiple -> exercises batch padding + multi-step grid

    key = jax.random.PRNGKey(0)
    kx, kp = jax.random.split(key)
    x = jax.random.normal(kx, (batch, input_size), jnp.float32)
    w1, b1, w2, b2 = init_params(kp, input_size, output_size, hidden_size)

    # Small block_b so the small test still runs a multi-step pipelined grid.
    out = encode_mlp(x, w1, b1, w2, b2, block_b=64)
    out = jax.block_until_ready(out)

    ref = reference_mlp(x, w1, b1, w2, b2)
    assert out.shape == (batch, output_size)
    # bf16 MXU operands with f32 accumulation -> loosened tolerance vs f32 reference.
    assert jnp.allclose(out, ref, atol=2e-2, rtol=2e-2), "mismatch vs reference"

    print("KERNEL_OK")
</pallas_src>

<mosaic_0001>
module attributes {stable_mosaic.version = 11 : i64} {
  func.func @_mlp_kernel(%arg0: i32, %arg1: memref<64x16xbf16, #tpu.memory_space<vmem>>, %arg2: memref<16x32xbf16, #tpu.memory_space<vmem>>, %arg3: memref<1x32xf32, #tpu.memory_space<vmem>>, %arg4: memref<32x128xbf16, #tpu.memory_space<vmem>>, %arg5: memref<1x128xf32, #tpu.memory_space<vmem>>, %arg6: memref<64x128xf32, #tpu.memory_space<vmem>>) attributes {dimension_semantics = [#tpu.dimension_semantics<parallel>], iteration_bounds = array<i64: 4>, scalar_prefetch = 0 : i64, scratch_operands = 0 : i64, tpu.core_type = #tpu.core_type<tc>, window_params = [{transform_indices = @transform_0, window_bounds = array<i64: 64, 16>}, {pipeline_mode = #tpu.pipeline_mode<synchronous>, transform_indices = @transform_1, window_bounds = array<i64: 16, 32>}, {pipeline_mode = #tpu.pipeline_mode<synchronous>, transform_indices = @transform_2, window_bounds = array<i64: 1, 32>}, {pipeline_mode = #tpu.pipeline_mode<synchronous>, transform_indices = @transform_3, window_bounds = array<i64: 32, 128>}, {pipeline_mode = #tpu.pipeline_mode<synchronous>, transform_indices = @transform_4, window_bounds = array<i64: 1, 128>}, {transform_indices = @transform_5, window_bounds = array<i64: 64, 128>}]} {
    %c0 = arith.constant 0 : index
    %c0_0 = arith.constant 0 : index
    %0 = vector.load %arg1[%c0, %c0_0] : memref<64x16xbf16, #tpu.memory_space<vmem>>, vector<64x16xbf16>
    %c0_1 = arith.constant 0 : index
    %c0_2 = arith.constant 0 : index
    %1 = vector.load %arg2[%c0_1, %c0_2] : memref<16x32xbf16, #tpu.memory_space<vmem>>, vector<16x32xbf16>
    %cst = arith.constant dense<0.000000e+00> : vector<64x32xf32>
    %2 = tpu.matmul %0, %1, %cst {dimension_numbers = #tpu.dot_dimension_numbers<[1], [0], [0], [1], [0, 0, 1, 1], [], []>} : vector<64x16xbf16>, vector<16x32xbf16>, vector<64x32xf32> -> vector<64x32xf32>
    %c0_3 = arith.constant 0 : index
    %c0_4 = arith.constant 0 : index
    %3 = vector.load %arg3[%c0_3, %c0_4] : memref<1x32xf32, #tpu.memory_space<vmem>>, vector<1x32xf32>
    %4 = vector.broadcast %3 : vector<1x32xf32> to vector<64x32xf32>
    %5 = arith.addf %2, %4 : vector<64x32xf32>
    %cst_5 = arith.constant 0.000000e+00 : f32
    %6 = vector.broadcast %cst_5 : f32 to vector<64x32xf32>
    %7 = arith.cmpf ogt, %5, %6 : vector<64x32xf32>
    %cst_6 = arith.constant 0.00999999977 : f32
    %8 = vector.broadcast %cst_6 : f32 to vector<64x32xf32>
    %9 = arith.mulf %8, %5 : vector<64x32xf32>
    %10 = arith.select %7, %5, %9 : vector<64x32xi1>, vector<64x32xf32>
    %11 = arith.truncf %10 : vector<64x32xf32> to vector<64x32xbf16>
    %c0_7 = arith.constant 0 : index
    %c0_8 = arith.constant 0 : index
    %12 = vector.load %arg4[%c0_7, %c0_8] : memref<32x128xbf16, #tpu.memory_space<vmem>>, vector<32x128xbf16>
    %cst_9 = arith.constant dense<0.000000e+00> : vector<64x128xf32>
    %13 = tpu.matmul %11, %12, %cst_9 {dimension_numbers = #tpu.dot_dimension_numbers<[1], [0], [0], [1], [0, 0, 1, 1], [], []>} : vector<64x32xbf16>, vector<32x128xbf16>, vector<64x128xf32> -> vector<64x128xf32>
    %c0_10 = arith.constant 0 : index
    %c0_11 = arith.constant 0 : index
    %14 = vector.load %arg5[%c0_10, %c0_11] : memref<1x128xf32, #tpu.memory_space<vmem>>, vector<1x128xf32>
    %15 = vector.broadcast %14 : vector<1x128xf32> to vector<64x128xf32>
    %16 = arith.addf %13, %15 : vector<64x128xf32>
    %c0_12 = arith.constant 0 : index
    %c0_13 = arith.constant 0 : index
    %17 = vector.load %arg6[%c0_12, %c0_13] : memref<64x128xf32, #tpu.memory_space<vmem>>, vector<64x128xf32>
    tpu.vector_store %arg6[%c0_12, %c0_13], %16 {strides = array<i32>} : memref<64x128xf32, #tpu.memory_space<vmem>>, vector<64x128xf32>,
    return
  }
  func.func @transform_0(%arg0: i32) -> (i32, i32) {
    %c0_i32 = arith.constant 0 : i32
    %c0_i32_0 = arith.constant 0 : i32
    return %arg0, %c0_i32 : i32, i32
  }
  func.func @transform_1(%arg0: i32) -> (i32, i32) {
    %c0_i32 = arith.constant 0 : i32
    %c0_i32_0 = arith.constant 0 : i32
    %c0_i32_1 = arith.constant 0 : i32
    return %c0_i32, %c0_i32_0 : i32, i32
  }
  func.func @transform_2(%arg0: i32) -> (i32, i32) {
    %c0_i32 = arith.constant 0 : i32
    %c0_i32_0 = arith.constant 0 : i32
    %c0_i32_1 = arith.constant 0 : i32
    return %c0_i32, %c0_i32_0 : i32, i32
  }
  func.func @transform_3(%arg0: i32) -> (i32, i32) {
    %c0_i32 = arith.constant 0 : i32
    %c0_i32_0 = arith.constant 0 : i32
    %c0_i32_1 = arith.constant 0 : i32
    return %c0_i32, %c0_i32_0 : i32, i32
  }
  func.func @transform_4(%arg0: i32) -> (i32, i32) {
    %c0_i32 = arith.constant 0 : i32
    %c0_i32_0 = arith.constant 0 : i32
    %c0_i32_1 = arith.constant 0 : i32
    return %c0_i32, %c0_i32_0 : i32, i32
  }
  func.func @transform_5(%arg0: i32) -> (i32, i32) {
    %c0_i32 = arith.constant 0 : i32
    %c0_i32_0 = arith.constant 0 : i32
    return %arg0, %c0_i32 : i32, i32
  }
}

</mosaic_0001>

<llo_original>
// kernel: tpu_custom_call.1
$region0: #{tpu_custom_call.1}
  #allocation0 [shape = 'u32[]', space=smem, size = 0x4, offset = 0x4, fixed_abs, tag = 'smem constant byte address 0x4 - core index']
  #allocation1 [shape = 'u32[144,128]{1,0:T(1,128)}', space=vmem, size = 0x12000, scoped, tag = 'internal scratch']
  %s0 = inlined_call_operand.vmem [shape: bf16[256,16], index: 0, kind: input, shape index: {}]
  %s1 = inlined_call_operand.vmem [shape: bf16[16,32], index: 1, kind: input, shape index: {}]
  %s2 = inlined_call_operand.vmem [shape: f32[1,32], index: 2, kind: input, shape index: {}]
  %s3 = inlined_call_operand.vmem [shape: bf16[32,128], index: 3, kind: input, shape index: {}]
  %s4 = inlined_call_operand.vmem [shape: f32[1,128], index: 4, kind: input, shape index: {}]
  %s5 = inlined_call_operand.hbm [shape: f32[256,128], index: 5, kind: output, shape index: {}]
  %s6 = sld [smem:[#allocation0]]
  $region53: #{tpu_custom_call.1} parent=0
    _
  %s8 = ssub.s32 1, %s6
  %s9 = scalar_select 0, %s8, %s6
  $region1: #{tpu_custom_call.1} parent=0
    #allocation2 [shape = 'u8[65536]{0}', space=vmem, size = 0x10000, scoped, tag = 'output window, operand 0']
    #allocation3 [shape = 's32[2]{0}', space=sflag, size = 0x8, scoped, tag = 'scoped memory for tpu_custom_call.1']
    %10 = vsyncpa [#allocation3], 0
    %s11 = scalar_lea.sflag [#allocation3], 1
    %12 = vsyncpa %s11, 0
    loop: start=0, step=1, limit=6
    $region2: #{tpu_custom_call.1} parent=1 // loop_pre_header
      _
    $region3: #{tpu_custom_call.1} parent=1 // loop_header
      %s14 = sphi 0, %s18
      %p15 = scmp.ge.s32.totalorder %s14, 6
      %s24 = sphi 0, %s26
      %s27 = sphi 0, %s24
      %s28 = sphi 0, %s27
      %s44 = sphi 0, %s28
      %s48 = sphi 0, %s48
      %s50 = sphi 0, %s48
      %s51 = sphi 0, %s50
      %s65 = sphi 0, %s51
      %s69 = sphi 0, %s69
      %s71 = sphi 0, %s69
      %s72 = sphi 0, %s71
      %s86 = sphi 0, %s72
      %s90 = sphi 0, %s90
      %s92 = sphi 0, %s90
      %s93 = sphi 0, %s92
      %s107 = sphi 0, %s93
      %s111 = sphi 0, %s111
      %s113 = sphi 0, %s111
      %s114 = sphi 0, %s113
      %s128 = sphi 0, %s114
      %s134 = sphi 0, %s136
      %s137 = sphi 0, %s134
      %s138 = sphi 0, %s137
      %s154 = sphi 0, %s138
    $region4: #{tpu_custom_call.1} parent=1 // loop_header_branch
      %17 = sbr.rel (%p15) target = $region8
    $region5: #{tpu_custom_call.1} parent=1 // loop_body
      %s19 = ssub.s32 %s14, 1
      %s20 = ssub.s32 %s14, 2
      %s21 = sadd.s32 %s14, 1
      %s22 = ssub.s32 %s14, %s21
      %p23 = scmp.eq.s32.totalorder %s22, 0
      %s25 = sadd.s32 %s24, 1
      %s26 = scalar_select %p23, %s24, %s25
      %p29 = pneg %p23
      %p30 = scmp.eq.s32.totalorder %s14, 3
      %p31 = por %p29, %p30
      %p32 = scmp.ne.s32.totalorder %s24, %s27
      %p33 = scmp.eq.s32.totalorder %s14, 0
      %p34 = por %p32, %p33
      %p35 = scmp.ne.s32.totalorder %s24, %s27
      %p36 = scmp.eq.s32.totalorder %s19, 3
      %p37 = por %p35, %p36
      %p38 = scmp.ne.s32.totalorder %s27, %s28
      %p39 = scmp.eq.s32.totalorder %s19, 0
      %p40 = por %p38, %p39
      %p41 = scmp.ne.s32.totalorder %s27, %s28
      %p42 = scmp.eq.s32.totalorder %s20, 3
      %p43 = por %p41, %p42
      %p45 = scmp.ne.s32.totalorder %s28, %s44
      %p46 = scmp.eq.s32.totalorder %s20, 0
      %p47 = por %p45, %p46
      %s49 = sadd.s32 %s48, 1
      %p52 = scmp.eq.s32.totalorder %s14, 3
      %p53 = scmp.ne.s32.totalorder %s48, %s50
      %p54 = scmp.eq.s32.totalorder %s14, 0
      %p55 = por %p53, %p54
      %p56 = scmp.ne.s32.totalorder %s48, %s50
      %p57 = scmp.eq.s32.totalorder %s19, 3
      %p58 = por %p56, %p57
      %p59 = scmp.ne.s32.totalorder %s50, %s51
      %p60 = scmp.eq.s32.totalorder %s19, 0
      %p61 = por %p59, %p60
      %p62 = scmp.ne.s32.totalorder %s50, %s51
      %p63 = scmp.eq.s32.totalorder %s20, 3
      %p64 = por %p62, %p63
      %p66 = scmp.ne.s32.totalorder %s51, %s65
      %p67 = scmp.eq.s32.totalorder %s20, 0
      %p68 = por %p66, %p67
      %s70 = sadd.s32 %s69, 1
      %p73 = scmp.eq.s32.totalorder %s14, 3
      %p74 = scmp.ne.s32.totalorder %s69, %s71
      %p75 = scmp.eq.s32.totalorder %s14, 0
      %p76 = por %p74, %p75
      %p77 = scmp.ne.s32.totalorder %s69, %s71
      %p78 = scmp.eq.s32.totalorder %s19, 3
      %p79 = por %p77, %p78
      %p80 = scmp.ne.s32.totalorder %s71, %s72
      %p81 = scmp.eq.s32.totalorder %s19, 0
      %p82 = por %p80, %p81
      %p83 = scmp.ne.s32.totalorder %s71, %s72
      %p84 = scmp.eq.s32.totalorder %s20, 3
      %p85 = por %p83, %p84
      %p87 = scmp.ne.s32.totalorder %s72, %s86
      %p88 = scmp.eq.s32.totalorder %s20, 0
      %p89 = por %p87, %p88
      %s91 = sadd.s32 %s90, 1
      %p94 = scmp.eq.s32.totalorder %s14, 3
      %p95 = scmp.ne.s32.totalorder %s90, %s92
      %p96 = scmp.eq.s32.totalorder %s14, 0
      %p97 = por %p95, %p96
      %p98 = scmp.ne.s32.totalorder %s90, %s92
      %p99 = scmp.eq.s32.totalorder %s19, 3
      %p100 = por %p98, %p99
      %p101 = scmp.ne.s32.totalorder %s92, %s93
      %p102 = scmp.eq.s32.totalorder %s19, 0
      %p103 = por %p101, %p102
      %p104 = scmp.ne.s32.totalorder %s92, %s93
      %p105 = scmp.eq.s32.totalorder %s20, 3
      %p106 = por %p104, %p105
      %p108 = scmp.ne.s32.totalorder %s93, %s107
      %p109 = scmp.eq.s32.totalorder %s20, 0
      %p110 = por %p108, %p109
      %s112 = sadd.s32 %s111, 1
      %p115 = scmp.eq.s32.totalorder %s14, 3
      %p116 = scmp.ne.s32.totalorder %s111, %s113
      %p117 = scmp.eq.s32.totalorder %s14, 0
      %p118 = por %p116, %p117
      %p119 = scmp.ne.s32.totalorder %s111, %s113
      %p120 = scmp.eq.s32.totalorder %s19, 3
      %p121 = por %p119, %p120
      %p122 = scmp.ne.s32.totalorder %s113, %s114
      %p123 = scmp.eq.s32.totalorder %s19, 0
      %p124 = por %p122, %p123
      %p125 = scmp.ne.s32.totalorder %s113, %s114
      %p126 = scmp.eq.s32.totalorder %s20, 3
      %p127 = por %p125, %p126
      %p129 = scmp.ne.s32.totalorder %s114, %s128
      %p130 = scmp.eq.s32.totalorder %s20, 0
      %p131 = por %p129, %p130
      %s132 = ssub.s32 %s14, %s21
      %p133 = scmp.eq.s32.totalorder %s132, 0
      %s135 = sadd.s32 %s134, 1
      %s136 = scalar_select %p133, %s134, %s135
      %p139 = pneg %p133
      %p140 = scmp.eq.s32.totalorder %s14, 3
      %p141 = por %p139, %p140
      %p142 = scmp.ne.s32.totalorder %s134, %s137
      %p143 = scmp.eq.s32.totalorder %s14, 0
      %p144 = por %p142, %p143
      %p145 = scmp.ne.s32.totalorder %s134, %s137
      %p146 = scmp.eq.s32.totalorder %s19, 3
      %p147 = por %p145, %p146
      %p148 = scmp.ne.s32.totalorder %s137, %s138
      %p149 = scmp.eq.s32.totalorder %s19, 0
      %p150 = por %p148, %p149
      %p151 = scmp.ne.s32.totalorder %s137, %s138
      %p152 = scmp.eq.s32.totalorder %s20, 3
      %p153 = por %p151, %p152
      %p155 = scmp.ne.s32.totalorder %s138, %s154
      %p156 = scmp.eq.s32.totalorder %s20, 0
      %p157 = por %p155, %p156
      %p158 = scmp.le.s32.totalorder 1, %s14
      %p159 = scmp.lt.s32.totalorder %s14, 5
      %p160 = pnand %p158, %p159
      %p161 = pneg %p160
      // Predicated region
      $region9: #{tpu_custom_call.1} parent=5 // pred_check
        _
      $region10: #{tpu_custom_call.1} parent=5 // pred_check_branch
        %163 = sbr.rel (%p160) target = $region12
      $region11: #{tpu_custom_call.1} parent=5 // pred_region
        %s164 = ssub.s32 %s14, 1
        // Predicated region
        $region13: #{tpu_custom_call.1} parent=11 // pred_check
          %p165 = pneg %p61
        $region14: #{tpu_custom_call.1} parent=11 // pred_check_branch
          %167 = sbr.rel (%p165) target = $region16
        $region15: #{tpu_custom_call.1} parent=11 // pred_region
          _
        $region16: #{tpu_custom_call.1} parent=11 // pred_fallthru
          _
        // Predicated region
        $region17: #{tpu_custom_call.1} parent=11 // pred_check
          %p168 = pneg %p82
        $region18: #{tpu_custom_call.1} parent=11 // pred_check_branch
          %170 = sbr.rel (%p168) target = $region20
        $region19: #{tpu_custom_call.1} parent=11 // pred_region
          _
        $region20: #{tpu_custom_call.1} parent=11 // pred_fallthru
          _
        // Predicated region
        $region21: #{tpu_custom_call.1} parent=11 // pred_check
          %p171 = pneg %p103
        $region22: #{tpu_custom_call.1} parent=11 // pred_check_branch
          %173 = sbr.rel (%p171) target = $region24
        $region23: #{tpu_custom_call.1} parent=11 // pred_region
          _
        $region24: #{tpu_custom_call.1} parent=11 // pred_fallthru
          _
        // Predicated region
        $region25: #{tpu_custom_call.1} parent=11 // pred_check
          %p174 = pneg %p124
        $region26: #{tpu_custom_call.1} parent=11 // pred_check_branch
          %176 = sbr.rel (%p174) target = $region28
        $region27: #{tpu_custom_call.1} parent=11 // pred_region
          _
        $region28: #{tpu_custom_call.1} parent=11 // pred_fallthru
          _
      $region12: #{tpu_custom_call.1} parent=5 // pred_fallthru
        _
      %p177 = scmp.lt.s32.totalorder %s14, 4
      // Predicated region
      $region29: #{tpu_custom_call.1} parent=5 // pred_check
        %p178 = pneg %p177
      $region30: #{tpu_custom_call.1} parent=5 // pred_check_branch
        %180 = sbr.rel (%p178) target = $region32
      $region31: #{tpu_custom_call.1} parent=5 // pred_region
        // Predicated region
        $region33: #{tpu_custom_call.1} parent=31 // pred_check
          %p181 = pneg %p34
        $region34: #{tpu_custom_call.1} parent=31 // pred_check_branch
          %183 = sbr.rel (%p181) target = $region36
        $region35: #{tpu_custom_call.1} parent=31 // pred_region
          %s184 = smul.u32 8, %s14
          %p185 = scmp.lt.s32.totalorder %s184, 31
          %s186 = scalar_select %p185, %s184, 31
          %s187 = smul.addr %s186, 4
          %s188 = scalar_lea.vmem %s0, %s187
          %s189 = smul.u32 8, %s14
        $region36: #{tpu_custom_call.1} parent=31 // pred_fallthru
          _
      $region32: #{tpu_custom_call.1} parent=5 // pred_fallthru
        _
      %p190 = scmp.le.s32.totalorder 1, %s14
      %p191 = scmp.lt.s32.totalorder %s14, 5
      %p192 = pnand %p190, %p191
      %p193 = pneg %p192
      // Predicated region
      $region37: #{tpu_custom_call.1} parent=5 // pred_check
        _
      $region38: #{tpu_custom_call.1} parent=5 // pred_check_branch
        %195 = sbr.rel (%p192) target = $region40
      $region39: #{tpu_custom_call.1} parent=5 // pred_region
        %s196 = ssub.s32 %s14, 1
        %s197 = smul.u32 8, %s19
        %p198 = scmp.lt.s32.totalorder %s197, 31
        %s199 = scalar_select %p198, %s197, 31
        %s200 = smul.addr %s199, 4
        %s201 = scalar_lea.vmem %s0, %s200
        %p202 = pneg %p40
        %p203 = pneg %p37
        %p204 = pneg %p61
        %p205 = pneg %p58
        %p206 = pneg %p82
        %p207 = pneg %p79
        %p208 = pneg %p103
        %p209 = pneg %p100
        %p210 = pneg %p124
        %p211 = pneg %p121
        %p212 = pneg %p150
        %p213 = pneg %p147
        %s214 = sand.u32 %s137, 1
        %s215 = scalar_lea.sflag [#allocation3], %s214
        %s216 = sand.u32 %s137, 1
        %s217 = smul.addr %s216, 64
        %s218 = scalar_lea.vmem [#allocation2], %s217
        %s219 = smul.u32 8, %s19
        %p220 = scmp.lt.s32.totalorder %s219, 31
        %s221 = scalar_select %p220, %s219, 31
        %s222 = smul.addr %s221, 4
        %s223 = scalar_lea.vmem %s0, %s222
        %s224 = smul.u32 8, %s19
        %s225 = smul.u32 8, %s19
        %v227 = vld [vmem:[%s223] sm:$0xf]
        %v228 = vld [vmem:[%s223 + $0x4] sm:$0xf]
        %v229 = vld [vmem:[%s223 + $0x8] sm:$0xf]
        %v230 = vld [vmem:[%s223 + $0xc] sm:$0xf]
        %v231 = vld [vmem:[%s223 + $0x10] sm:$0xf]
        %v232 = vld [vmem:[%s223 + $0x14] sm:$0xf]
        %v233 = vld [vmem:[%s223 + $0x18] sm:$0xf]
        %v234 = vld [vmem:[%s223 + $0x1c] sm:$0xf]
        %v235 = vld [vmem:[%s1] sm:$0xf]
        %v236 = vld [vmem:[%s1 + $0x4] sm:$0xf]
        %v237 = vld [vmem:[%s2] sm:$0x1]
        %v239 = vlaneseq
        %v240 = vshrl.u32 %v239, 7
        %v241 = vsub.s32 0, %v240
        %v242 = vrot.slane %v237, %v241
        %v252 = vunpack.c.l.b16 %v227
        %v253 = vunpack.c.l.b16 %v228
        %v254 = vunpack.c.l.b16 %v229
        %v255 = vunpack.c.l.b16 %v230
        %v256 = vunpack.c.l.b16 %v231
        %v257 = vunpack.c.l.b16 %v232
        %v258 = vunpack.c.l.b16 %v233
        %v259 = vunpack.c.l.b16 %v234
        %v260 = vpack.c.b16 %v253, %v252
        %v261 = vpack.c.b16 %v255, %v254
        %v262 = vpack.c.b16 %v257, %v256
        %v263 = vpack.c.b16 %v259, %v258
        %v266 = vunpack.c.l.b16 %v235
        %v267 = vunpack.c.l.b16 %v236
        %v268 = vpack.c.b16 %v267, %v266
        %vm270 = vcmask 130048
        %v272 = vsel %vm270, %v260, 0
        %v275 = vsel %vm270, %v261, 0
        %v278 = vsel %vm270, %v262, 0
        %v281 = vsel %vm270, %v263, 0
        %283 = vmatprep.subr.bf16.mxu0 0
        %284 = vmatpush1.bf16.msra.mxu0 0
        %285 = vmatprep.subr.bf16.mxu0 0
        %286 = vmatpush1.bf16.msra.mxu0 0
        %287 = vmatprep.subr.bf16.mxu0 0
        %288 = vmatpush1.bf16.msra.mxu0 0
        %289 = vmatprep.subr.bf16.mxu0 0
        %290 = vmatpush1.bf16.msra.mxu0 0
        %291 = vmatprep.subr.bf16.mxu0 0
        %292 = vmatpush1.bf16.msra.mxu0 0
        %293 = vmatprep.subr.bf16.mxu0 0
        %294 = vmatpush1.bf16.msra.mxu0 0
        %295 = vmatprep.subr.bf16.mxu0 0
        %296 = vmatpush1.bf16.msra.mxu0 0
        %297 = vmatprep.subr.bf16.mxu0 0
        %298 = vmatpush1.bf16.msra.mxu0 %v268
        %299 = vmatprep.subr.bf16.mxu0 0
        %300 = vmatpush2.bf16.msra.mxu0 0
        %301 = vmatprep.subr.bf16.mxu0 0
        %302 = vmatpush2.bf16.msra.mxu0 0
        %303 = vmatprep.subr.bf16.mxu0 0
        %304 = vmatpush2.bf16.msra.mxu0 0
        %305 = vmatprep.subr.bf16.mxu0 0
        %306 = vmatpush2.bf16.msra.mxu0 0
        %307 = vmatprep.subr.bf16.mxu0 0
        %308 = vmatpush2.bf16.msra.mxu0 0
        %309 = vmatprep.subr.bf16.mxu0 0
        %310 = vmatpush2.bf16.msra.mxu0 0
        %311 = vmatprep.subr.bf16.mxu0 0
        %312 = vmatpush2.bf16.msra.mxu0 0
        %313 = vmatprep.subr.bf16.mxu0 0
        %314 = vmatpush2.bf16.msra.mxu0 0
        %315 = vmatprep.mubr.bf16.mxu0 0
        %316 = vmatmul.mubr.bf16.gmra.mxu0 %v272
        %v317 = vpop.f32.mrf.mxu0
        %v318 = vadd.f32 %v242, %v317
        %v319 = vpop.f32.mrf.mxu0
        %v320 = vpop.f32.mrf.mxu0
        %v321 = vadd.f32 %v242, %v320
        %v322 = vpop.f32.mrf.mxu0
        %323 = vmatprep.mubr.bf16.mxu0 0
        %324 = vmatmul.mubr.bf16.gmra.mxu0 %v275
        %v325 = vpop.f32.mrf.mxu0
        %v326 = vadd.f32 %v242, %v325
        %v327 = vpop.f32.mrf.mxu0
        %v328 = vpop.f32.mrf.mxu0
        %v329 = vadd.f32 %v242, %v328
        %v330 = vpop.f32.mrf.mxu0
        %331 = vmatprep.mubr.bf16.mxu0 0
        %332 = vmatmul.mubr.bf16.gmra.mxu0 %v278
        %v333 = vpop.f32.mrf.mxu0
        %v334 = vadd.f32 %v242, %v333
        %v335 = vpop.f32.mrf.mxu0
        %v336 = vpop.f32.mrf.mxu0
        %v337 = vadd.f32 %v242, %v336
        %v338 = vpop.f32.mrf.mxu0
        %339 = vmatprep.mubr.bf16.mxu0 0
        %340 = vmatmul.mubr.bf16.gmra.mxu0 %v281
        %v341 = vpop.f32.mrf.mxu0
        %v342 = vadd.f32 %v242, %v341
        %v343 = vpop.f32.mrf.mxu0
        %v344 = vpop.f32.mrf.mxu0
        %v345 = vadd.f32 %v242, %v344
        %v346 = vpop.f32.mrf.mxu0
        %347 = vdwg.mxu0
        %vm348 = vcmp.gt.f32.partialorder %v318, 0.0
        %vm349 = vcmp.gt.f32.partialorder %v321, 0.0
        %vm350 = vcmp.gt.f32.partialorder %v326, 0.0
        %vm351 = vcmp.gt.f32.partialorder %v329, 0.0
        %vm352 = vcmp.gt.f32.partialorder %v334, 0.0
        %vm353 = vcmp.gt.f32.partialorder %v337, 0.0
        %vm354 = vcmp.gt.f32.partialorder %v342, 0.0
        %vm355 = vcmp.gt.f32.partialorder %v345, 0.0
        %v356 = vmul.f32 %v318, 0.01
        %v357 = vmul.f32 %v321, 0.01
        %v358 = vmul.f32 %v326, 0.01
        %v359 = vmul.f32 %v329, 0.01
        %v360 = vmul.f32 %v334, 0.01
        %v361 = vmul.f32 %v337, 0.01
        %v362 = vmul.f32 %v342, 0.01
        %v363 = vmul.f32 %v345, 0.01
        %v364 = vsel %vm348, %v318, %v356
        %v365 = vsel %vm349, %v321, %v357
        %v366 = vsel %vm350, %v326, %v358
        %v367 = vsel %vm351, %v329, %v359
        %v368 = vsel %vm352, %v334, %v360
        %v369 = vsel %vm353, %v337, %v361
        %v370 = vsel %vm354, %v342, %v362
        %v371 = vsel %vm355, %v345, %v363
        %v372 = vpack.c.bf16 %v365, %v364
        %v373 = vpack.c.bf16 %v367, %v366
        %v374 = vpack.c.bf16 %v369, %v368
        %v375 = vpack.c.bf16 %v371, %v370
        %v376 = vld [vmem:[%s3] sm:$0xf]
        %v377 = vld [vmem:[%s3 + $0x4] sm:$0xf]
        %v378 = vld [vmem:[%s3 + $0x8] sm:$0xf]
        %v379 = vld [vmem:[%s3 + $0xc] sm:$0xf]
        %v380 = vld [vmem:[%s4] sm:$0x1]
        %v382 = vlaneseq
        %v383 = vshrl.u32 %v382, 7
        %v384 = vsub.s32 0, %v383
        %v385 = vrot.slane %v380, %v384
        %v391 = vunpack.c.l.b16 %v376
        %v392 = vunpack.c.l.b16 %v377
        %v393 = vunpack.c.l.b16 %v378
        %v394 = vunpack.c.l.b16 %v379
        %v395 = vpack.c.b16 %v392, %v391
        %v396 = vpack.c.b16 %v394, %v393
        %vm399 = vcmask 261120
        %v401 = vsel %vm399, %v372, 0
        %v404 = vsel %vm399, %v373, 0
        %v407 = vsel %vm399, %v374, 0
        %v410 = vsel %vm399, %v375, 0
        %412 = vmatprep.subr.bf16.mxu0 0
        %413 = vmatpush1.bf16.msra.mxu0 0
        %414 = vmatprep.subr.bf16.mxu0 0
        %415 = vmatpush1.bf16.msra.mxu0 0
        %416 = vmatprep.subr.bf16.mxu0 0
        %417 = vmatpush1.bf16.msra.mxu0 0
        %418 = vmatprep.subr.bf16.mxu0 0
        %419 = vmatpush1.bf16.msra.mxu0 0
        %420 = vmatprep.subr.bf16.mxu0 0
        %421 = vmatpush1.bf16.msra.mxu0 0
        %422 = vmatprep.subr.bf16.mxu0 0
        %423 = vmatpush1.bf16.msra.mxu0 0
        %424 = vmatprep.subr.bf16.mxu0 0
        %425 = vmatpush1.bf16.msra.mxu0 %v396
        %426 = vmatprep.subr.bf16.mxu0 0
        %427 = vmatpush1.bf16.msra.mxu0 %v395
        %428 = vmatprep.subr.bf16.mxu0 0
        %429 = vmatpush2.bf16.msra.mxu0 0
        %430 = vmatprep.subr.bf16.mxu0 0
        %431 = vmatpush2.bf16.msra.mxu0 0
        %432 = vmatprep.subr.bf16.mxu0 0
        %433 = vmatpush2.bf16.msra.mxu0 0
        %434 = vmatprep.subr.bf16.mxu0 0
        %435 = vmatpush2.bf16.msra.mxu0 0
        %436 = vmatprep.subr.bf16.mxu0 0
        %437 = vmatpush2.bf16.msra.mxu0 0
        %438 = vmatprep.subr.bf16.mxu0 0
        %439 = vmatpush2.bf16.msra.mxu0 0
        %440 = vmatprep.subr.bf16.mxu0 0
        %441 = vmatpush2.bf16.msra.mxu0 0
        %442 = vmatprep.subr.bf16.mxu0 0
        %443 = vmatpush2.bf16.msra.mxu0 0
        %444 = vmatprep.mubr.bf16.mxu0 0
        %445 = vmatmul.mubr.bf16.gmra.mxu0 %v401
        %v446 = vpop.f32.mrf.mxu0
        %v447 = vadd.f32 %v385, %v446
        %v448 = vpop.f32.mrf.mxu0
        %v449 = vpop.f32.mrf.mxu0
        %v450 = vadd.f32 %v385, %v449
        %v451 = vpop.f32.mrf.mxu0
        %452 = vmatprep.mubr.bf16.mxu0 0
        %453 = vmatmul.mubr.bf16.gmra.mxu0 %v404
        %v454 = vpop.f32.mrf.mxu0
        %v455 = vadd.f32 %v385, %v454
        %v456 = vpop.f32.mrf.mxu0
        %v457 = vpop.f32.mrf.mxu0
        %v458 = vadd.f32 %v385, %v457
        %v459 = vpop.f32.mrf.mxu0
        %460 = vmatprep.mubr.bf16.mxu0 0
        %461 = vmatmul.mubr.bf16.gmra.mxu0 %v407
        %v462 = vpop.f32.mrf.mxu0
        %v463 = vadd.f32 %v385, %v462
        %v464 = vpop.f32.mrf.mxu0
        %v465 = vpop.f32.mrf.mxu0
        %v466 = vadd.f32 %v385, %v465
        %v467 = vpop.f32.mrf.mxu0
        %468 = vmatprep.mubr.bf16.mxu0 0
        %469 = vmatmul.mubr.bf16.gmra.mxu0 %v410
        %v470 = vpop.f32.mrf.mxu0
        %v471 = vadd.f32 %v385, %v470
        %v472 = vpop.f32.mrf.mxu0
        %v473 = vpop.f32.mrf.mxu0
        %v474 = vadd.f32 %v385, %v473
        %v475 = vpop.f32.mrf.mxu0
        %476 = vdwg.mxu0
        %477 = vst [vmem:[%s218] sm:$0xff] %v447
        %478 = vst [vmem:[%s218 + $0x8] sm:$0xff] %v450
        %479 = vst [vmem:[%s218 + $0x10] sm:$0xff] %v455
        %480 = vst [vmem:[%s218 + $0x18] sm:$0xff] %v458
        %481 = vst [vmem:[%s218 + $0x20] sm:$0xff] %v463
        %482 = vst [vmem:[%s218 + $0x28] sm:$0xff] %v466
        %483 = vst [vmem:[%s218 + $0x30] sm:$0xff] %v471
        %484 = vst [vmem:[%s218 + $0x38] sm:$0xff] %v474
        %s485 = sand.u32 %s137, 1
        %s486 = scalar_lea.sflag [#allocation3], %s485
        %s487 = sand.u32 %s137, 1
        %s488 = smul.addr %s487, 64
        %s489 = scalar_lea.vmem [#allocation2], %s488
        // Predicated region
        $region41: #{tpu_custom_call.1} parent=39 // pred_check
          %p490 = pneg %p147
        $region42: #{tpu_custom_call.1} parent=39 // pred_check_branch
          %492 = sbr.rel (%p490) target = $region44
        $region43: #{tpu_custom_call.1} parent=39 // pred_region
          %s493 = smul.u32 8, %s19
          %s495 = ssub.s32 1024, 1024
          %496 = vsyncadd %s486, %s495
          %s497 = smul.addr %s493, 128
          %s498 = scalar_lea.hbm %s5, %s497
          %s499 = sshll.u32 %s489, 4
          %s500 = int_to_ptr.vmem [resolvable:$true] %s499
          %505 = dma.vmem_to_hbm [thread:$0]  %s500, 1024, %s498, %s486, 128, 128, 8
        $region44: #{tpu_custom_call.1} parent=39 // pred_fallthru
          _
      $region40: #{tpu_custom_call.1} parent=5 // pred_fallthru
        _
      %p506 = scmp.le.s32.totalorder 2, %s14
      // Predicated region
      $region45: #{tpu_custom_call.1} parent=5 // pred_check
        %p507 = pneg %p506
      $region46: #{tpu_custom_call.1} parent=5 // pred_check_branch
        %509 = sbr.rel (%p507) target = $region48
      $region47: #{tpu_custom_call.1} parent=5 // pred_region
        %s510 = ssub.s32 %s14, 2
        // Predicated region
        $region49: #{tpu_custom_call.1} parent=47 // pred_check
          %p511 = pneg %p153
        $region50: #{tpu_custom_call.1} parent=47 // pred_check_branch
          %513 = sbr.rel (%p511) target = $region52
        $region51: #{tpu_custom_call.1} parent=47 // pred_region
          %s514 = sand.u32 %s138, 1
          %s515 = scalar_lea.sflag [#allocation3], %s514
          %s516 = sand.u32 %s138, 1
          %s517 = smul.addr %s516, 64
          %s518 = scalar_lea.vmem [#allocation2], %s517
          %519 = dma.done %s515, 1024
        $region52: #{tpu_custom_call.1} parent=47 // pred_fallthru
          _
      $region48: #{tpu_custom_call.1} parent=5 // pred_fallthru
        _
    $region6: #{tpu_custom_call.1} parent=1 // loop_footer
      %s18 = sadd.s32 1, %s14
    $region7: #{tpu_custom_call.1} parent=1 // loop_footer_branch
      %13 = sbr.rel target = $region3
    $region8: #{tpu_custom_call.1} parent=1 // loop_exit
      _
    %520 = vsyncpa [#allocation3], 1
    %s521 = scalar_lea.sflag [#allocation3], 1
    %522 = vsyncpa %s521, 1

</llo_original>
